<compile_context>
chip_gen: v6e
topology: v6e:2x2x1
jax: 0.10.0
libtpu: 0.0.40
codegen_flags: <defaults>
</compile_context>

<pallas_src>
import functools

import jax
import jax.numpy as jnp
import numpy as np
from jax import lax
from jax.experimental import pallas as pl
from jax.experimental.pallas import tpu as pltpu

_TARGET_BLOCK_BYTES = 4 * 1024 * 1024   # ~4 MiB per input block (x2 double-buffered)
_MIN_DUALCORE_BYTES = 1 * 1024 * 1024   # below this, don't force a 2-way row split


def _sublane_pack(dtype):
    """Packed sublane count: 8 for 4-byte, 16 for 2-byte, 32 for 1-byte dtypes."""
    return max(8, 32 // max(jnp.dtype(dtype).itemsize, 1))


def _sentinels(dtype):
    """(+big, -big) identity values for min / max."""
    if jnp.issubdtype(dtype, jnp.floating):
        return jnp.array(jnp.inf, dtype), jnp.array(-jnp.inf, dtype)
    if jnp.dtype(dtype) == jnp.bool_:
        return jnp.array(True), jnp.array(False)
    info = jnp.iinfo(dtype)
    return jnp.array(info.max, dtype), jnp.array(info.min, dtype)


# ---------------------------------------------------------------------------
# Kernels
# ---------------------------------------------------------------------------

def _range_kernel_single(x_ref, min_ref, max_ref):
    """tile_b == b (one lane tile per row tile): branch-free hot path."""
    x = x_ref[...]
    min_ref[...] = jnp.min(x, axis=-1, keepdims=True)
    max_ref[...] = jnp.max(x, axis=-1, keepdims=True)


def _lane_fold(v, combine):
    """Element-wise (VPU) pairwise fold of (rows, 128*2^m) down to (rows, 128)."""
    width = v.shape[-1]
    while width > 128:
        half = width // 2
        v = combine(v[:, :half], v[:, half:])
        width = half
    return v


def _range_kernel_multi(x_ref, min_ref, max_ref, min_acc, max_acc, *,
                        tile_b, b_total, needs_mask):
    """Lane axis tiled: element-wise accumulate into a (tile_rows, 128) scratch;
    cross-lane reduce + narrow output store only on the last lane tile."""
    j = pl.program_id(1)
    nj = pl.num_programs(1)
    hi, lo = _sentinels(x_ref.dtype)

    @pl.when(j == 0)
    def _():
        min_acc[...] = jnp.full(min_acc.shape, hi, dtype=min_acc.dtype)
        max_acc[...] = jnp.full(max_acc.shape, lo, dtype=max_acc.dtype)

    def step(masked):
        x = x_ref[...]
        if masked:
            lane = lax.broadcasted_iota(jnp.int32, x.shape, 1)
            valid = (j * tile_b + lane) < b_total
            x_min_src = jnp.where(valid, x, hi)
            x_max_src = jnp.where(valid, x, lo)
        else:
            x_min_src = x
            x_max_src = x
        min_acc[...] = jnp.minimum(min_acc[...], _lane_fold(x_min_src, jnp.minimum))
        max_acc[...] = jnp.maximum(max_acc[...], _lane_fold(x_max_src, jnp.maximum))

    if needs_mask:
        pl.when(j < nj - 1)(lambda: step(False))   # hot path: no mask
        pl.when(j == nj - 1)(lambda: step(True))   # ragged tail only (runs once)
    else:
        step(False)

    @pl.when(j == nj - 1)
    def _():
        min_ref[...] = jnp.min(min_acc[...], axis=-1, keepdims=True)
        max_ref[...] = jnp.max(max_acc[...], axis=-1, keepdims=True)


# ---------------------------------------------------------------------------
# Tiling heuristics
# ---------------------------------------------------------------------------

def _row_split(rows, b, pack, itemsize):
    """Split each length-b row into s sub-rows (s divides b; a free contiguous
    reshape).  Densifies sublanes for per-tensor / few-row inputs and keeps
    blocks in the single-lane-tile regime for very long rows."""
    target_elems = max(pack * 128, _TARGET_BLOCK_BYTES // itemsize)
    max_cols = max(256, target_elems // pack)
    s = 1
    while (b % (2 * s) == 0 and b // (2 * s) >= 128
           and (rows * s < 2 * pack or b // s > max_cols)):
        s *= 2
    return s


def _choose_tiles(rows, b, itemsize, pack):
    """Pick (tile_rows, tile_b, needs_mask): ~4 MiB blocks, (pack, 128) aligned."""
    target_elems = max(pack * 128, _TARGET_BLOCK_BYTES // itemsize)

    # Row (sublane) tile: multiple of the packed sublane count, or full extent.
    if rows <= pack:
        tile_rows = rows
    else:
        by_budget = max(pack, (target_elems // max(b, 1)) // pack * pack)
        tile_rows = min((rows // pack) * pack, 1024, by_budget)
        # v7x: give the 'parallel' row axis >= 2 tiles when there is enough work.
        if (pl.cdiv(rows, tile_rows) < 2 and rows >= 2 * pack
                and rows * b * itemsize >= _MIN_DUALCORE_BYTES):
            tile_rows = max(pack, ((rows + 1) // 2) // pack * pack)

    # Lane tile: the whole row if it fits the budget (common case), else 128 * 2^m.
    budget_b = max(128, target_elems // max(tile_rows, pack))
    if b <= budget_b:
        tile_b = b
    else:
        tile_b = 128
        while tile_b * 2 <= budget_b:
            tile_b *= 2

    return tile_rows, tile_b, (b % tile_b) != 0


# ---------------------------------------------------------------------------
# pallas_call wrapper
# ---------------------------------------------------------------------------

@functools.partial(jax.jit, static_argnames=("tile_rows", "tile_b", "needs_mask"))
def _minmax_pallas(x2, *, tile_rows, tile_b, needs_mask):
    """x2: (rows, b) -> per-row (min, max), each of shape (rows, 1)."""
    rows, b = x2.shape
    n_row_tiles = pl.cdiv(rows, tile_rows)
    n_lane_tiles = pl.cdiv(b, tile_b)
    out_sds = jax.ShapeDtypeStruct((rows, 1), x2.dtype)

    block_bytes = tile_rows * tile_b * x2.dtype.itemsize
    vmem_limit = int(min(48 * 1024 * 1024,
                         max(16 * 1024 * 1024, 4 * block_bytes + 4 * 1024 * 1024)))

    if n_lane_tiles == 1:
        grid = (n_row_tiles,)
        kernel = _range_kernel_single
        in_specs = [pl.BlockSpec((tile_rows, tile_b), lambda i: (i, 0))]
        out_specs = (pl.BlockSpec((tile_rows, 1), lambda i: (i, 0)),
                     pl.BlockSpec((tile_rows, 1), lambda i: (i, 0)))
        scratch_shapes = []
        dims = ("parallel",)
    else:
        grid = (n_row_tiles, n_lane_tiles)
        kernel = functools.partial(_range_kernel_multi, tile_b=tile_b,
                                   b_total=b, needs_mask=needs_mask)
        in_specs = [pl.BlockSpec((tile_rows, tile_b), lambda i, j: (i, j))]
        out_specs = (pl.BlockSpec((tile_rows, 1), lambda i, j: (i, 0)),
                     pl.BlockSpec((tile_rows, 1), lambda i, j: (i, 0)))
        scratch_shapes = [pltpu.VMEM((tile_rows, 128), x2.dtype),
                          pltpu.VMEM((tile_rows, 128), x2.dtype)]
        dims = ("parallel", "arbitrary")   # rows independent; lane tiles = reduction

    return pl.pallas_call(
        kernel,
        out_shape=(out_sds, out_sds),
        grid_spec=pltpu.PrefetchScalarGridSpec(
            num_scalar_prefetch=0,
            grid=grid,
            in_specs=in_specs,
            out_specs=out_specs,
            scratch_shapes=scratch_shapes,
        ),
        compiler_params=pltpu.CompilerParams(
            dimension_semantics=dims,
            vmem_limit_bytes=vmem_limit,
        ),
    )(x2)


def range_tracker_forward(x, tracker_shape):
    """Equivalent of RangeTracker.forward (the values passed to update_range).

    Returns (min_val, max_val) with input sizes on kept dims and 1 on reduced dims.
    """
    ndim = len(tracker_shape)
    assert x.ndim == ndim, "input rank must match tracker shape rank"

    keep_dims = [d for d, sz in enumerate(tracker_shape) if sz != 1]
    out_shape = tuple(x.shape[d] if d in keep_dims else 1 for d in range(ndim))

    if not keep_dims:
        # Per-tensor min/max.
        a, k, b = 1, 1, int(np.prod(x.shape, dtype=np.int64))
        x3 = x.reshape(1, 1, b)
    elif keep_dims == list(range(keep_dims[0], keep_dims[-1] + 1)):
        # Kept dims form a contiguous run: free (contiguous) reshape, no transpose.
        d0, d1 = keep_dims[0], keep_dims[-1]
        a = int(np.prod(x.shape[:d0], dtype=np.int64))
        k = int(np.prod(x.shape[d0:d1 + 1], dtype=np.int64))
        b = int(np.prod(x.shape[d1 + 1:], dtype=np.int64))
        x3 = x.reshape(a, k, b)
    else:
        # TODO(synk): non-contiguous kept dims need a materialized transpose (extra
        # HBM copy); rare for quantization trackers.
        reduce_dims = [d for d in range(ndim) if d not in keep_dims]
        xp = jnp.transpose(x, [*keep_dims, *reduce_dims])
        a = 1
        k = int(np.prod([x.shape[d] for d in keep_dims], dtype=np.int64))
        b = int(np.prod(x.shape, dtype=np.int64)) // max(k, 1)
        x3 = xp.reshape(1, k, b)

    pack = _sublane_pack(x.dtype)
    itemsize = jnp.dtype(x.dtype).itemsize
    s = _row_split(a * k, b, pack, itemsize)                 # free row densification
    rows, cols = a * k * s, b // s
    x2 = x3.reshape(a, k, s, cols).reshape(rows, cols)

    tile_rows, tile_b, needs_mask = _choose_tiles(rows, cols, itemsize, pack)
    min2, max2 = _minmax_pallas(x2, tile_rows=tile_rows, tile_b=tile_b,
                                needs_mask=needs_mask)        # (rows, 1) each

    # Tiny XLA epilogue: fold the leading reduced block and the row-split factor.
    min_val = jnp.min(min2.reshape(a, k, s), axis=(0, 2)).reshape(out_shape)
    max_val = jnp.max(max2.reshape(a, k, s), axis=(0, 2)).reshape(out_shape)
    return min_val, max_val


if __name__ == "__main__":
    keys = jax.random.split(jax.random.PRNGKey(0), 6)

    # Case 1: per-channel activation tracker, NCHW input, tracker (1, C, 1, 1).
    N, C, H, W = 2, 4, 16, 16
    x = jax.random.normal(keys[0], (N, C, H, W), dtype=jnp.float32)
    mn, mx = jax.block_until_ready(range_tracker_forward(x, (1, C, 1, 1)))
    assert mn.shape == (1, C, 1, 1) and mx.shape == (1, C, 1, 1)
    np.testing.assert_array_equal(
        np.asarray(mn), np.asarray(jnp.min(x, axis=(0, 2, 3), keepdims=True)))
    np.testing.assert_array_equal(
        np.asarray(mx), np.asarray(jnp.max(x, axis=(0, 2, 3), keepdims=True)))

    # Case 2: per-output-channel weight tracker, OIHW weight, tracker (O, 1, 1, 1).
    O, I, KH, KW = 4, 8, 3, 3
    w = jax.random.normal(keys[1], (O, I, KH, KW), dtype=jnp.float32)
    wmn, wmx = jax.block_until_ready(range_tracker_forward(w, (O, 1, 1, 1)))
    np.testing.assert_array_equal(
        np.asarray(wmn), np.asarray(jnp.min(w, axis=(1, 2, 3), keepdims=True)))
    np.testing.assert_array_equal(
        np.asarray(wmx), np.asarray(jnp.max(w, axis=(1, 2, 3), keepdims=True)))

    # Case 3: per-tensor tracker (all dims reduced), tracker (1, 1, 1, 1).
    y = jax.random.normal(keys[2], (N, C, H, W), dtype=jnp.float32)
    ymn, ymx = jax.block_until_ready(range_tracker_forward(y, (1, 1, 1, 1)))
    np.testing.assert_array_equal(np.asarray(ymn),
                                  np.asarray(jnp.min(y).reshape(1, 1, 1, 1)))
    np.testing.assert_array_equal(np.asarray(ymx),
                                  np.asarray(jnp.max(y).reshape(1, 1, 1, 1)))

    # Case 4: bf16 per-channel tracker (exercises packed-sublane tile rules).
    xb = jax.random.normal(keys[3], (N, C, H, W), dtype=jnp.bfloat16)
    bmn, bmx = jax.block_until_ready(range_tracker_forward(xb, (1, C, 1, 1)))
    np.testing.assert_array_equal(
        np.asarray(bmn), np.asarray(jnp.min(xb, axis=(0, 2, 3), keepdims=True)))
    np.testing.assert_array_equal(
        np.asarray(bmx), np.asarray(jnp.max(xb, axis=(0, 2, 3), keepdims=True)))

    # Case 5: multi-lane-tile kernel with a ragged last tile (masked epilogue path).
    x4 = jax.random.normal(keys[4], (16, 700), dtype=jnp.float32)
    mn4, mx4 = jax.block_until_ready(
        _minmax_pallas(x4, tile_rows=8, tile_b=256, needs_mask=True))
    np.testing.assert_array_equal(
        np.asarray(mn4), np.asarray(jnp.min(x4, axis=1, keepdims=True)))
    np.testing.assert_array_equal(
        np.asarray(mx4), np.asarray(jnp.max(x4, axis=1, keepdims=True)))

    # Case 6: multi-lane-tile kernel, evenly divisible (no mask anywhere).
    x5 = jax.random.normal(keys[5], (8, 512), dtype=jnp.float32)
    mn5, mx5 = jax.block_until_ready(
        _minmax_pallas(x5, tile_rows=8, tile_b=256, needs_mask=False))
    np.testing.assert_array_equal(
        np.asarray(mn5), np.asarray(jnp.min(x5, axis=1, keepdims=True)))
    np.testing.assert_array_equal(
        np.asarray(mx5), np.asarray(jnp.max(x5, axis=1, keepdims=True)))

    print("KERNEL_OK")
</pallas_src>

<mosaic_0001>
module attributes {stable_mosaic.version = 11 : i64} {
  func.func @_range_kernel_single(%arg0: i32, %arg1: memref<16x128xf32, #tpu.memory_space<vmem>>, %arg2: memref<16x1xf32, #tpu.memory_space<vmem>>, %arg3: memref<16x1xf32, #tpu.memory_space<vmem>>) attributes {dimension_semantics = [#tpu.dimension_semantics<parallel>], iteration_bounds = array<i64: 1>, scalar_prefetch = 0 : i64, scratch_operands = 0 : i64, tpu.core_type = #tpu.core_type<tc>, window_params = [{transform_indices = @transform_0, window_bounds = array<i64: 16, 128>}, {transform_indices = @transform_1, window_bounds = array<i64: 16, 1>}, {transform_indices = @transform_2, window_bounds = array<i64: 16, 1>}]} {
    %c0 = arith.constant 0 : index
    %c0_0 = arith.constant 0 : index
    %0 = vector.load %arg1[%c0, %c0_0] : memref<16x128xf32, #tpu.memory_space<vmem>>, vector<16x128xf32>
    %cst = arith.constant dense<0x7F800000> : vector<16xf32>
    %1 = vector.multi_reduction <minimumf>, %0, %cst [1] : vector<16x128xf32> to vector<16xf32>
    %2 = vector.shape_cast %1 : vector<16xf32> to vector<16x1xf32>
    %c0_1 = arith.constant 0 : index
    %c0_2 = arith.constant 0 : index
    %3 = vector.load %arg2[%c0_1, %c0_2] : memref<16x1xf32, #tpu.memory_space<vmem>>, vector<16x1xf32>
    tpu.vector_store %arg2[%c0_1, %c0_2], %2 {strides = array<i32>} : memref<16x1xf32, #tpu.memory_space<vmem>>, vector<16x1xf32>,
    %cst_3 = arith.constant dense<0xFF800000> : vector<16xf32>
    %4 = vector.multi_reduction <maximumf>, %0, %cst_3 [1] : vector<16x128xf32> to vector<16xf32>
    %5 = vector.shape_cast %4 : vector<16xf32> to vector<16x1xf32>
    %c0_4 = arith.constant 0 : index
    %c0_5 = arith.constant 0 : index
    %6 = vector.load %arg3[%c0_4, %c0_5] : memref<16x1xf32, #tpu.memory_space<vmem>>, vector<16x1xf32>
    tpu.vector_store %arg3[%c0_4, %c0_5], %5 {strides = array<i32>} : memref<16x1xf32, #tpu.memory_space<vmem>>, vector<16x1xf32>,
    return
  }
  func.func @transform_0(%arg0: i32) -> (i32, i32) {
    %c0_i32 = arith.constant 0 : i32
    %c0_i32_0 = arith.constant 0 : i32
    return %arg0, %c0_i32 : i32, i32
  }
  func.func @transform_1(%arg0: i32) -> (i32, i32) {
    %c0_i32 = arith.constant 0 : i32
    %c0_i32_0 = arith.constant 0 : i32
    return %arg0, %c0_i32 : i32, i32
  }
  func.func @transform_2(%arg0: i32) -> (i32, i32) {
    %c0_i32 = arith.constant 0 : i32
    %c0_i32_0 = arith.constant 0 : i32
    return %arg0, %c0_i32 : i32, i32
  }
}

</mosaic_0001>

<llo_original>
// kernel: _minmax_pallas.1
$region0: #{_minmax_pallas.1}
  #allocation0 [shape = 'u32[]', space=smem, size = 0x4, offset = 0x4, fixed_abs, tag = 'smem constant byte address 0x4 - core index']
  #allocation1 [shape = 'u32[144,128]{1,0:T(1,128)}', space=vmem, size = 0x12000, scoped, tag = 'internal scratch']
  %s0 = inlined_call_operand.hbm [shape: f32[16,128], index: 0, kind: input, shape index: {}]
  %s1 = inlined_call_operand.vmem [shape: f32[16,1], index: 1, kind: output, shape index: {0}]
  %s2 = inlined_call_operand.vmem [shape: f32[16,1], index: 2, kind: output, shape index: {1}]
  %3 = xla_tuple %s1, %s2
  %s4 = sld [smem:[#allocation0]]
  $region26: #{_minmax_pallas.1} parent=0
    _
  %s6 = ssub.s32 1, %s4
  %s7 = scalar_select 0, %s6, %s4
  $region1: #{_minmax_pallas.1} parent=0
    #allocation2 [shape = 'u8[8192]{0}', space=vmem, size = 0x2000, scoped, tag = 'input window, operand 0, single buffered']
    #allocation3 [shape = 's32[1]{0}', space=sflag, size = 0x4, scoped, tag = 'scoped memory for _minmax_pallas.1']
    %8 = vsyncpa [#allocation3], 0
    // Predicated region
    $region2: #{_minmax_pallas.1} parent=1 // pred_check
      _
    $region3: #{_minmax_pallas.1} parent=1 // pred_check_branch
      %10 = sbr.rel (0) target = $region5
    $region4: #{_minmax_pallas.1} parent=1 // pred_region
      %s12 = ssub.s32 256, 256
      %13 = vsyncadd [#allocation3], %s12
      %s14 = sshll.u32 [#allocation2], 4
      %s15 = int_to_ptr.vmem [resolvable:$true] %s14
      %20 = dma.hbm_to_vmem [thread:$0]  %s0, 256, %s15, [#allocation3], 128, 128, 8
    $region5: #{_minmax_pallas.1} parent=1 // pred_fallthru
      _
    // Predicated region
    $region6: #{_minmax_pallas.1} parent=1 // pred_check
      _
    $region7: #{_minmax_pallas.1} parent=1 // pred_check_branch
      %22 = sbr.rel (0) target = $region9
    $region8: #{_minmax_pallas.1} parent=1 // pred_region
      %23 = dma.done [#allocation3], 256
    $region9: #{_minmax_pallas.1} parent=1 // pred_fallthru
      _
    %v24 = vld [vmem:[#allocation2] sm:$0xff]
    %v25 = vld [vmem:[#allocation2 + $0x8] sm:$0xff]
    %26 = vmin.xlane.f32.xlu0 %v24
    %v27 = vpop.xlane.xlu0 %26
    %28 = vmin.xlane.f32.xlu0 %v25
    %v29 = vpop.xlane.xlu0 %28
    %vm30 = vcmask 7168
    %31 = vst.msk [vmem:[%s1] sm:$0xff] %vm30, %v27
    %32 = vst.msk [vmem:[%s1 + $0x8] sm:$0xff] %vm30, %v29
    %33 = vmax.xlane.f32.xlu0 %v24
    %v34 = vpop.xlane.xlu0 %33
    %35 = vmax.xlane.f32.xlu0 %v25
    %v36 = vpop.xlane.xlu0 %35
    %37 = vst.msk [vmem:[%s2] sm:$0xff] %vm30, %v34
    %38 = vst.msk [vmem:[%s2 + $0x8] sm:$0xff] %vm30, %v36
    // Predicated region
    $region10: #{_minmax_pallas.1} parent=1 // pred_check
      _
    $region11: #{_minmax_pallas.1} parent=1 // pred_check_branch
      %40 = sbr.rel (0) target = $region13
    $region12: #{_minmax_pallas.1} parent=1 // pred_region
      _
    $region13: #{_minmax_pallas.1} parent=1 // pred_fallthru
      _
    // Predicated region
    $region14: #{_minmax_pallas.1} parent=1 // pred_check
      _
    $region15: #{_minmax_pallas.1} parent=1 // pred_check_branch
      %42 = sbr.rel (0) target = $region17
    $region16: #{_minmax_pallas.1} parent=1 // pred_region
      _
    $region17: #{_minmax_pallas.1} parent=1 // pred_fallthru
      _
    // Predicated region
    $region18: #{_minmax_pallas.1} parent=1 // pred_check
      _
    $region19: #{_minmax_pallas.1} parent=1 // pred_check_branch
      %44 = sbr.rel (0) target = $region21
    $region20: #{_minmax_pallas.1} parent=1 // pred_region
      _
    $region21: #{_minmax_pallas.1} parent=1 // pred_fallthru
      _
    // Predicated region
    $region22: #{_minmax_pallas.1} parent=1 // pred_check
      _
    $region23: #{_minmax_pallas.1} parent=1 // pred_check_branch
      %46 = sbr.rel (0) target = $region25
    $region24: #{_minmax_pallas.1} parent=1 // pred_region
      _
    $region25: #{_minmax_pallas.1} parent=1 // pred_fallthru
      _
    %47 = vsyncpa [#allocation3], 1

</llo_original>
